<compile_context>
chip_gen: v6e
topology: v6e:2x2x1
jax: 0.10.0
libtpu: 0.0.40
codegen_flags: <defaults>
</compile_context>

<pallas_src>
import functools

import jax
import jax.numpy as jnp
from jax.experimental import pallas as pl
from jax.experimental.pallas import tpu as pltpu


def _round_up(x, m):
    return (x + m - 1) // m * m


def _pick_tb(B, tile_b=None):
    # batch tile: multiple of 8 sublanes; 256 default (full MXU tiles on v6e/v7x,
    # halves grid trip-count overhead vs 128 for the big memory-bank pass).
    if tile_b is None:
        tile_b = min(256, _round_up(B, 8))
    return _round_up(max(int(tile_b), 8), 8)


def _pick_tc(C, tile_c=None):
    # class tile: multiple of 128 lanes (lane-dense outputs -> unmasked vst).
    # When C allows it, keep >= 2 class tiles so the "parallel" grid axis feeds both
    # v7x TensorCores; cap at 2048 so proxy tile + epilogue temps stay well inside
    # v7x's 64 MiB VMEM while still amortizing the memory-bank HBM restream.
    if tile_c is None:
        c128 = _round_up(C, 128)
        tile_c = 128 if c128 <= 128 else min(2048, max(128, _round_up(c128 // 2, 128)))
    return _round_up(max(int(tile_c), 128), 128)


def _l2_normalize(A, eps=1e-12):
    # F.normalize(x, p=2, dim=1, eps) == x * rsqrt(max(|x|^2, eps^2)); rsqrt -> EUP.
    A = jnp.asarray(A, jnp.float32)
    inv = jax.lax.rsqrt(jnp.maximum(jnp.sum(A * A, axis=-1, keepdims=True), eps * eps))
    return A * inv


# ---------------------------------------------------------------------------
# Pallas kernel: per-(class-tile, batch-tile) Proxy-Anchor raw partial sums
# ---------------------------------------------------------------------------
def _pa_sums_kernel(x_ref, p_ref, t_ref, pos_ref, neg_ref, *, alpha, mrg):
    ci = pl.program_id(0)            # proxy/class tile ("parallel")
    bi = pl.program_id(1)            # batch tile       ("arbitrary" -> reduction)
    tc = p_ref.shape[0]

    @pl.when(bi == 0)
    def _():
        pos_ref[...] = jnp.zeros_like(pos_ref)
        neg_ref[...] = jnp.zeros_like(neg_ref)

    # cos = Xn @ Pn^T via contraction on dim 1 of both operands (no proxy transpose
    # materialized in front of the MXU). bf16 inputs, f32 accumulation.
    cos = jax.lax.dot_general(
        x_ref[...], p_ref[...],
        dimension_numbers=(((1,), (1,)), ((), ())),
        preferred_element_type=jnp.float32)                     # (tb, tc) f32

    labels = t_ref[...]                                         # (tb, 1) int32, -1 = pad
    class_ids = ci * tc + jax.lax.broadcasted_iota(jnp.int32, (1, tc), 1)
    pos_mask = class_ids == labels                              # (tb, tc) bool

    # Single fused exponential. Padded rows get bias = -1e30 -> exp == 0 exactly, so
    # they vanish from BOTH sums; padded proxy columns are simply sliced off in the
    # wrapper (only [:C] of the outputs is ever read).
    bias = jnp.where(labels >= 0, jnp.float32(alpha * mrg), jnp.float32(-1e30))  # (tb, 1)
    sign = jnp.where(pos_mask, jnp.float32(-alpha), jnp.float32(alpha))          # (tb, tc)
    e = jnp.exp(sign * cos + bias)                                               # (tb, tc)

    pos_part = jnp.sum(jnp.where(pos_mask, e, 0.0), axis=0, keepdims=True)       # (1, tc)
    tot_part = jnp.sum(e, axis=0, keepdims=True)
    pos_ref[...] += pos_part
    neg_ref[...] += tot_part - pos_part


# ---------------------------------------------------------------------------
# Kernel wrapper: raw per-class exp sums for a set of rows
# ---------------------------------------------------------------------------
def pa_partial_sums(Xn, T, Pn_pad, *, alpha, mrg, tb, tc):
    """Xn: (B, D) pre-normalized (bf16), T: (B,) int32 (-1 = padding row),
    Pn_pad: (c_pad, D) pre-normalized padded proxies (bf16).
    Returns (pos_sum, neg_sum), each (c_pad,) f32 raw (pre-log) sums."""
    B, D = Xn.shape
    c_pad = Pn_pad.shape[0]
    assert c_pad % tc == 0, (c_pad, tc)
    b_pad = _round_up(B, tb)

    Xp = jnp.pad(Xn, ((0, b_pad - B), (0, 0)))
    Tp = jnp.pad(jnp.asarray(T, jnp.int32).reshape(-1), (0, b_pad - B),
                 constant_values=-1).reshape(-1, 1)

    kernel = functools.partial(_pa_sums_kernel, alpha=float(alpha), mrg=float(mrg))
    grid = (c_pad // tc, b_pad // tb)

    # VMEM budget from actual need (double-buffered bf16 inputs + (tb, tc) epilogue
    # temps), clamped at 40 MiB so a v6e-tuned config still leaves slack on v7x's
    # 64 MiB physical VMEM.
    itemsize = jnp.dtype(Xp.dtype).itemsize
    vmem_est = (2 * itemsize * (tb * D + tc * D)     # double-buffered X / P tiles
                + 2 * 4 * tb                         # labels
                + 2 * 2 * 4 * tc                     # accumulator outputs
                + 6 * tb * tc * 4)                   # epilogue intermediates (rough)
    vmem_limit = int(min(40 << 20, max(16 << 20, vmem_est + (4 << 20))))

    pos, neg = pl.pallas_call(
        kernel,
        out_shape=(jax.ShapeDtypeStruct((1, c_pad), jnp.float32),
                   jax.ShapeDtypeStruct((1, c_pad), jnp.float32)),
        grid_spec=pltpu.PrefetchScalarGridSpec(
            num_scalar_prefetch=0,
            grid=grid,
            in_specs=[
                # TODO(synk): if xprof on v5e shows exposed X-tile DMA, add
                # pipeline_mode=pl.Buffered(3) to this spec.
                pl.BlockSpec((tb, D), lambda ci, bi: (bi, 0)),   # normalized X tile
                pl.BlockSpec((tc, D), lambda ci, bi: (ci, 0)),   # normalized proxy tile
                pl.BlockSpec((tb, 1), lambda ci, bi: (bi, 0)),   # labels
            ],
            out_specs=[
                pl.BlockSpec((1, tc), lambda ci, bi: (0, ci)),   # raw pos sums
                pl.BlockSpec((1, tc), lambda ci, bi: (0, ci)),   # raw neg sums
            ],
        ),
        compiler_params=pltpu.CompilerParams(
            dimension_semantics=("parallel", "arbitrary"),
            vmem_limit_bytes=vmem_limit,
        ),
    )(Xp, Pn_pad, Tp)
    return pos[0], neg[0]


def pa_finalize(pos_raw, neg_raw, nb_classes):
    """Scalar finalize in the wrapper (off the kernel's critical path).
    Validity from the RAW pos sums (exp > 0, so raw sum > 0 iff class present)."""
    pos = pos_raw[:nb_classes]
    neg = neg_raw[:nb_classes]
    # Note: num_valid == 0 (no proxy class in the rows) -> inf/nan, same as PyTorch.
    num_valid = jnp.sum((pos > 0.0).astype(jnp.float32))
    pos_term = jnp.sum(jnp.log1p(pos)) / num_valid
    neg_term = jnp.sum(jnp.log1p(neg)) / nb_classes
    return pos_term + neg_term


def pa_loss(X, T, P, *, mrg=0.1, alpha=32.0, tile_b=None, tile_c=None,
            mxu_dtype=jnp.bfloat16):
    """Standalone Proxy-Anchor loss. X: (B, D), T: (B,) int labels, P: (C, D) proxies."""
    X = jnp.asarray(X, jnp.float32)
    P = jnp.asarray(P, jnp.float32)
    T = jnp.asarray(T, jnp.int32).reshape(-1)
    B, D = X.shape
    C = P.shape[0]
    tb = _pick_tb(B, tile_b)
    tc = _pick_tc(C, tile_c)
    c_pad = _round_up(C, tc)
    Xn = _l2_normalize(X).astype(mxu_dtype)                     # hoisted normalize + cast
    Pn = jnp.pad(_l2_normalize(P).astype(mxu_dtype), ((0, c_pad - C), (0, 0)))
    pos, neg = pa_partial_sums(Xn, T, Pn, alpha=alpha, mrg=mrg, tb=tb, tc=tc)
    return pa_finalize(pos, neg, C)


# ---------------------------------------------------------------------------
# BroadMemory (forward-pass semantics of the PyTorch module)
# ---------------------------------------------------------------------------
class BroadMemory:
    """JAX/Pallas port of the PyTorch `BroadMemory` module (criterion = Proxy-Anchor).

    The memory bank is a fixed-capacity (queue_size, D) FIFO padded with label -1:
    shapes stay static across steps (no recompiles) and padded rows are masked inside
    the kernel via T >= 0.  The broad loss reuses the batch partial sums, so each
    forward runs exactly two kernel passes (batch rows + memory rows).
    """

    def __init__(self, proxies, *, mrg=0.1, alpha=32.0, queue_size=8192,
                 compensate=False, mxu_dtype=jnp.bfloat16, tile_b=None, tile_c=None):
        self.proxies = jnp.asarray(proxies, jnp.float32)        # (nb_classes, sz_embed)
        self.nb_classes, self.sz_embed = self.proxies.shape
        self.mrg = float(mrg)
        self.alpha = float(alpha)
        self.queue_size = int(queue_size)
        self.compensate = bool(compensate)
        self.mxu_dtype = mxu_dtype
        self.tile_b = tile_b

        # fixed-capacity FIFO; label -1 marks empty slots
        self.feature_mb = jnp.zeros((self.queue_size, self.sz_embed), jnp.float32)
        self.label_mb = jnp.full((self.queue_size,), -1, jnp.int32)
        if self.compensate:
            self.proxy_mb = jnp.zeros((self.queue_size, self.sz_embed), jnp.float32)

        # Proxies are fixed for this forward-only port: normalize/cast/pad once.
        self._tc = _pick_tc(self.nb_classes, tile_c)
        self._c_pad = _round_up(self.nb_classes, self._tc)
        self._Pn_pad = jnp.pad(_l2_normalize(self.proxies).astype(self.mxu_dtype),
                               ((0, self._c_pad - self.nb_classes), (0, 0)))

    # --- criterion pieces -------------------------------------------------
    def _sums(self, X, T):
        tb = _pick_tb(X.shape[0], self.tile_b)
        Xn = _l2_normalize(X).astype(self.mxu_dtype)
        return pa_partial_sums(Xn, T, self._Pn_pad, alpha=self.alpha, mrg=self.mrg,
                               tb=tb, tc=self._tc)

    def _finalize(self, pos, neg):
        return pa_finalize(pos, neg, self.nb_classes)

    # --- memory bank ------------------------------------------------------
    def update(self, X, T):
        X = jnp.asarray(X, jnp.float32)
        T = jnp.asarray(T, jnp.int32).reshape(-1)
        b = min(X.shape[0], self.queue_size)
        Xq, Tq = X[-b:], T[-b:]
        # FIFO at fixed capacity: drop the oldest b slots, append the newest.
        self.feature_mb = jnp.concatenate([self.feature_mb[b:], Xq], axis=0)
        self.label_mb = jnp.concatenate([self.label_mb[b:], Tq], axis=0)
        if self.compensate:
            self.proxy_mb = jnp.concatenate([self.proxy_mb[b:], self.proxies[Tq]], axis=0)

    # --- forward ----------------------------------------------------------
    def forward(self, X, T):
        X = jnp.asarray(X, jnp.float32)
        T = jnp.asarray(T, jnp.int32).reshape(-1)

        if self.compensate:
            valid = (self.label_mb >= 0)[:, None]
            proxy_now = self.proxies[jnp.maximum(self.label_mb, 0)]
            delta_proxy = proxy_now - self.proxy_mb
            f_norm = jnp.linalg.norm(self.feature_mb, axis=1, keepdims=True)
            p_norm = jnp.linalg.norm(self.proxy_mb, axis=1, keepdims=True)
            scale = jnp.where(p_norm > 0, f_norm / p_norm, 0.0)
            mem_X = jnp.where(valid, self.feature_mb + scale * delta_proxy, 0.0)
        else:
            mem_X = self.feature_mb

        pos_b, neg_b = self._sums(X, T)                         # batch rows
        pos_m, neg_m = self._sums(mem_X, self.label_mb)         # memory rows (padded)

        batch_loss = self._finalize(pos_b, neg_b)
        # criterion(cat(memory, X)): per-class sums are additive over rows, so reuse
        # the batch partial sums instead of re-processing X / materializing the concat.
        broad_loss = self._finalize(pos_b + pos_m, neg_b + neg_m)

        self.update(X, T)
        return batch_loss + broad_loss

    __call__ = forward


# ---------------------------------------------------------------------------
# Pure-JAX references (mirror the PyTorch math; same matmul precision as kernel)
# ---------------------------------------------------------------------------
def _reference_pa_loss(X, T, P, *, mrg=0.1, alpha=32.0, mxu_dtype=jnp.bfloat16):
    nb_classes = P.shape[0]
    Xn = _l2_normalize(X)
    Pn = _l2_normalize(P)
    cos = jax.lax.dot_general(
        Xn.astype(mxu_dtype), Pn.astype(mxu_dtype),
        dimension_numbers=(((1,), (1,)), ((), ())),
        preferred_element_type=jnp.float32)
    one_hot = jax.nn.one_hot(jnp.asarray(T, jnp.int32), nb_classes, dtype=jnp.float32)
    pos_exp = jnp.exp(-alpha * (cos - mrg))
    neg_exp = jnp.exp(alpha * (cos + mrg))
    P_sum = jnp.sum(jnp.where(one_hot == 1, pos_exp, 0.0), axis=0)
    N_sum = jnp.sum(jnp.where(one_hot == 0, neg_exp, 0.0), axis=0)
    num_valid = jnp.sum((jnp.sum(one_hot, axis=0) != 0).astype(jnp.float32))
    pos_term = jnp.sum(jnp.log(1.0 + P_sum)) / num_valid
    neg_term = jnp.sum(jnp.log(1.0 + N_sum)) / nb_classes
    return pos_term + neg_term


def _reference_broad_forward(feature_mb, label_mb, proxies, X, T, *,
                             mrg=0.1, alpha=32.0, mxu_dtype=jnp.bfloat16):
    large_X = jnp.concatenate([feature_mb, jnp.asarray(X, jnp.float32)], axis=0)
    large_T = jnp.concatenate([label_mb, jnp.asarray(T, jnp.int32)], axis=0)
    batch_loss = _reference_pa_loss(X, T, proxies, mrg=mrg, alpha=alpha, mxu_dtype=mxu_dtype)
    broad_loss = _reference_pa_loss(large_X, large_T, proxies, mrg=mrg, alpha=alpha,
                                    mxu_dtype=mxu_dtype)
    return batch_loss + broad_loss


# ---------------------------------------------------------------------------
if __name__ == "__main__":
    nb_classes = 4
    sz_embed = 32
    batch = 6          # not a multiple of 8 -> exercises label-based row masking
    mrg, alpha = 0.1, 32.0

    key = jax.random.PRNGKey(0)
    kp, k1, k2, kt1, kt2 = jax.random.split(key, 5)

    # proxies: kaiming_uniform_(mode='fan_out') on (C, D) => bound = sqrt(6 / C)
    bound = (6.0 / nb_classes) ** 0.5
    P = jax.random.uniform(kp, (nb_classes, sz_embed), dtype=jnp.float32,
                           minval=-bound, maxval=bound)

    X1 = jax.random.normal(k1, (batch, sz_embed), dtype=jnp.float32)
    T1 = jax.random.randint(kt1, (batch,), 0, nb_classes, dtype=jnp.int32)
    X2 = jax.random.normal(k2, (batch, sz_embed), dtype=jnp.float32)
    T2 = jax.random.randint(kt2, (batch,), 0, nb_classes, dtype=jnp.int32)

    # Standalone Proxy-Anchor loss sanity check.
    l0 = jax.block_until_ready(pa_loss(X1, T1, P, mrg=mrg, alpha=alpha))
    r0 = _reference_pa_loss(X1, T1, P, mrg=mrg, alpha=alpha)
    assert jnp.isfinite(l0), l0
    assert jnp.allclose(l0, r0, rtol=2e-3, atol=2e-3), (l0, r0)

    # tile_b=8 forces multiple batch tiles for the memory-bank pass
    # (exercises the @pl.when init / accumulate path across the reduction axis).
    mem = BroadMemory(P, mrg=mrg, alpha=alpha, queue_size=32,
                      compensate=False, tile_b=8)

    ref_fmb = jnp.zeros((0, sz_embed), dtype=jnp.float32)
    ref_lmb = jnp.zeros((0,), dtype=jnp.int32)

    for Xb, Tb in ((X1, T1), (X2, T2)):
        ref = _reference_broad_forward(ref_fmb, ref_lmb, P, Xb, Tb, mrg=mrg, alpha=alpha)
        loss = mem.forward(Xb, Tb)
        loss = jax.block_until_ready(loss)
        assert jnp.isfinite(loss), loss
        assert jnp.allclose(loss, ref, rtol=2e-3, atol=2e-3), (loss, ref)
        # mirror the (dynamic, PyTorch-style) memory-bank update for the reference state
        ref_fmb = jnp.concatenate([ref_fmb, Xb], axis=0)
        ref_lmb = jnp.concatenate([ref_lmb, Tb], axis=0)

    print("KERNEL_OK")
</pallas_src>

<mosaic_0001>
module attributes {stable_mosaic.version = 11 : i64} {
  func.func @_pa_sums_kernel(%arg0: i32, %arg1: i32, %arg2: memref<8x32xbf16, #tpu.memory_space<vmem>>, %arg3: memref<128x32xbf16, #tpu.memory_space<vmem>>, %arg4: memref<8x1xi32, #tpu.memory_space<vmem>>, %arg5: memref<1x128xf32, #tpu.memory_space<vmem>>, %arg6: memref<1x128xf32, #tpu.memory_space<vmem>>) attributes {dimension_semantics = [#tpu.dimension_semantics<parallel>, #tpu.dimension_semantics<arbitrary>], iteration_bounds = array<i64: 1, 1>, scalar_prefetch = 0 : i64, scratch_operands = 0 : i64, tpu.core_type = #tpu.core_type<tc>, window_params = [{transform_indices = @transform_0, window_bounds = array<i64: 8, 32>}, {transform_indices = @transform_1, window_bounds = array<i64: 128, 32>}, {transform_indices = @transform_2, window_bounds = array<i64: 8, 1>}, {transform_indices = @transform_3, window_bounds = array<i64: 1, 128>}, {transform_indices = @transform_4, window_bounds = array<i64: 1, 128>}]} {
    %c0_i32 = arith.constant 0 : i32
    %0 = arith.cmpi eq, %arg1, %c0_i32 : i32
    %1 = arith.extui %0 : i1 to i32
    %c0_i32_0 = arith.constant 0 : i32
    %2 = arith.cmpi ne, %1, %c0_i32_0 : i32
    scf.if %2 {
      %cst_22 = arith.constant 0.000000e+00 : f32
      %39 = vector.broadcast %cst_22 : f32 to vector<1x128xf32>
      %c0_23 = arith.constant 0 : index
      %c0_24 = arith.constant 0 : index
      %40 = vector.load %arg5[%c0_23, %c0_24] : memref<1x128xf32, #tpu.memory_space<vmem>>, vector<1x128xf32>
      tpu.vector_store %arg5[%c0_23, %c0_24], %39 {strides = array<i32>} : memref<1x128xf32, #tpu.memory_space<vmem>>, vector<1x128xf32>,
      %cst_25 = arith.constant 0.000000e+00 : f32
      %41 = vector.broadcast %cst_25 : f32 to vector<1x128xf32>
      %c0_26 = arith.constant 0 : index
      %c0_27 = arith.constant 0 : index
      %42 = vector.load %arg6[%c0_26, %c0_27] : memref<1x128xf32, #tpu.memory_space<vmem>>, vector<1x128xf32>
      tpu.vector_store %arg6[%c0_26, %c0_27], %41 {strides = array<i32>} : memref<1x128xf32, #tpu.memory_space<vmem>>, vector<1x128xf32>,
    } else {
    }
    %c0 = arith.constant 0 : index
    %c0_1 = arith.constant 0 : index
    %3 = vector.load %arg2[%c0, %c0_1] : memref<8x32xbf16, #tpu.memory_space<vmem>>, vector<8x32xbf16>
    %c0_2 = arith.constant 0 : index
    %c0_3 = arith.constant 0 : index
    %4 = vector.load %arg3[%c0_2, %c0_3] : memref<128x32xbf16, #tpu.memory_space<vmem>>, vector<128x32xbf16>
    %cst = arith.constant dense<0.000000e+00> : vector<8x128xf32>
    %5 = tpu.matmul %3, %4, %cst {dimension_numbers = #tpu.dot_dimension_numbers<[1], [1], [0], [0], [0, 0, 1, 0], [], []>} : vector<8x32xbf16>, vector<128x32xbf16>, vector<8x128xf32> -> vector<8x128xf32>
    %c0_4 = arith.constant 0 : index
    %c0_5 = arith.constant 0 : index
    %6 = vector.load %arg4[%c0_4, %c0_5] : memref<8x1xi32, #tpu.memory_space<vmem>>, vector<8x1xi32>
    %c128_i32 = arith.constant 128 : i32
    %7 = arith.muli %arg0, %c128_i32 : i32
    %8 = tpu.iota {dimensions = array<i32: 1>} : vector<1x128xi32>
    %9 = vector.broadcast %7 : i32 to vector<1x128xi32>
    %10 = arith.addi %9, %8 : vector<1x128xi32>
    %11 = vector.broadcast %10 : vector<1x128xi32> to vector<8x128xi32>
    %12 = vector.broadcast %6 : vector<8x1xi32> to vector<8x128xi32>
    %13 = arith.cmpi eq, %11, %12 : vector<8x128xi32>
    %c0_i32_6 = arith.constant 0 : i32
    %14 = vector.broadcast %c0_i32_6 : i32 to vector<8x1xi32>
    %15 = arith.cmpi sge, %6, %14 : vector<8x1xi32>
    %cst_7 = arith.constant 3.200000e+00 : f32
    %cst_8 = arith.constant -1.000000e+30 : f32
    %16 = vector.broadcast %cst_7 : f32 to vector<8x1xf32>
    %17 = vector.broadcast %cst_8 : f32 to vector<8x1xf32>
    %18 = arith.select %15, %16, %17 : vector<8x1xi1>, vector<8x1xf32>
    %cst_9 = arith.constant -3.200000e+01 : f32
    %cst_10 = arith.constant 3.200000e+01 : f32
    %19 = vector.broadcast %cst_9 : f32 to vector<8x128xf32>
    %20 = vector.broadcast %cst_10 : f32 to vector<8x128xf32>
    %21 = arith.select %13, %19, %20 : vector<8x128xi1>, vector<8x128xf32>
    %22 = arith.mulf %21, %5 : vector<8x128xf32>
    %23 = vector.broadcast %18 : vector<8x1xf32> to vector<8x128xf32>
    %24 = arith.addf %22, %23 : vector<8x128xf32>
    %25 = math.exp %24 : vector<8x128xf32>
    %cst_11 = arith.constant 0.000000e+00 : f32
    %26 = vector.broadcast %cst_11 : f32 to vector<8x128xf32>
    %27 = arith.select %13, %25, %26 : vector<8x128xi1>, vector<8x128xf32>
    %cst_12 = arith.constant dense<0.000000e+00> : vector<128xf32>
    %28 = vector.multi_reduction <add>, %27, %cst_12 [0] : vector<8x128xf32> to vector<128xf32>
    %29 = vector.shape_cast %28 : vector<128xf32> to vector<1x128xf32>
    %cst_13 = arith.constant dense<0.000000e+00> : vector<128xf32>
    %30 = vector.multi_reduction <add>, %25, %cst_13 [0] : vector<8x128xf32> to vector<128xf32>
    %31 = vector.shape_cast %30 : vector<128xf32> to vector<1x128xf32>
    %c0_14 = arith.constant 0 : index
    %c0_15 = arith.constant 0 : index
    %32 = vector.load %arg5[%c0_14, %c0_15] : memref<1x128xf32, #tpu.memory_space<vmem>>, vector<1x128xf32>
    %33 = arith.addf %32, %29 : vector<1x128xf32>
    %c0_16 = arith.constant 0 : index
    %c0_17 = arith.constant 0 : index
    %34 = vector.load %arg5[%c0_16, %c0_17] : memref<1x128xf32, #tpu.memory_space<vmem>>, vector<1x128xf32>
    tpu.vector_store %arg5[%c0_16, %c0_17], %33 {strides = array<i32>} : memref<1x128xf32, #tpu.memory_space<vmem>>, vector<1x128xf32>,
    %c0_18 = arith.constant 0 : index
    %c0_19 = arith.constant 0 : index
    %35 = vector.load %arg6[%c0_18, %c0_19] : memref<1x128xf32, #tpu.memory_space<vmem>>, vector<1x128xf32>
    %36 = arith.subf %31, %29 : vector<1x128xf32>
    %37 = arith.addf %35, %36 : vector<1x128xf32>
    %c0_20 = arith.constant 0 : index
    %c0_21 = arith.constant 0 : index
    %38 = vector.load %arg6[%c0_20, %c0_21] : memref<1x128xf32, #tpu.memory_space<vmem>>, vector<1x128xf32>
    tpu.vector_store %arg6[%c0_20, %c0_21], %37 {strides = array<i32>} : memref<1x128xf32, #tpu.memory_space<vmem>>, vector<1x128xf32>,
    return
  }
  func.func @transform_0(%arg0: i32, %arg1: i32) -> (i32, i32) {
    %c0_i32 = arith.constant 0 : i32
    %c0_i32_0 = arith.constant 0 : i32
    return %arg1, %c0_i32 : i32, i32
  }
  func.func @transform_1(%arg0: i32, %arg1: i32) -> (i32, i32) {
    %c0_i32 = arith.constant 0 : i32
    %c0_i32_0 = arith.constant 0 : i32
    return %arg0, %c0_i32 : i32, i32
  }
  func.func @transform_2(%arg0: i32, %arg1: i32) -> (i32, i32) {
    %c0_i32 = arith.constant 0 : i32
    %c0_i32_0 = arith.constant 0 : i32
    return %arg1, %c0_i32 : i32, i32
  }
  func.func @transform_3(%arg0: i32, %arg1: i32) -> (i32, i32) {
    %c0_i32 = arith.constant 0 : i32
    %c0_i32_0 = arith.constant 0 : i32
    return %c0_i32, %arg0 : i32, i32
  }
  func.func @transform_4(%arg0: i32, %arg1: i32) -> (i32, i32) {
    %c0_i32 = arith.constant 0 : i32
    %c0_i32_0 = arith.constant 0 : i32
    return %c0_i32, %arg0 : i32, i32
  }
}

</mosaic_0001>

<llo_original>
// kernel: tpu_custom_call.1
$region0: #{tpu_custom_call.1}
  #allocation0 [shape = 'u32[]', space=smem, size = 0x4, offset = 0x4, fixed_abs, tag = 'smem constant byte address 0x4 - core index']
  #allocation1 [shape = 'u32[144,128]{1,0:T(1,128)}', space=vmem, size = 0x12000, scoped, tag = 'internal scratch']
  %s0 = inlined_call_operand.vmem [shape: bf16[8,32], index: 0, kind: input, shape index: {}]
  %s1 = inlined_call_operand.vmem [shape: bf16[128,32], index: 1, kind: input, shape index: {}]
  %s2 = inlined_call_operand.vmem [shape: s32[8,1], index: 2, kind: input, shape index: {}]
  %s3 = inlined_call_operand.hbm [shape: f32[1,128], index: 3, kind: output, shape index: {0}]
  %s4 = inlined_call_operand.hbm [shape: f32[1,128], index: 4, kind: output, shape index: {1}]
  %5 = xla_tuple %s3, %s4
  %s6 = sld [smem:[#allocation0]]
  $region34: #{tpu_custom_call.1} parent=0
    _
  %s8 = ssub.s32 1, %s6
  %s9 = scalar_select 0, %s8, %s6
  $region1: #{tpu_custom_call.1} parent=0
    #allocation2 [shape = 'u8[512]{0}', space=vmem, size = 0x400, scoped, tag = 'output window, operand 0, single buffered']
    #allocation3 [shape = 's32[1]{0}', space=sflag, size = 0x4, scoped, tag = 'scoped memory for tpu_custom_call.1']
    #allocation4 [shape = 'u8[512]{0}', space=vmem, size = 0x400, scoped, tag = 'output window, operand 1, single buffered']
    #allocation5 [shape = 's32[1]{0}', space=sflag, size = 0x4, scoped, tag = 'scoped memory for tpu_custom_call.1']
    %10 = vsyncpa [#allocation3], 0
    %11 = vsyncpa [#allocation5], 0
    // Predicated region
    $region2: #{tpu_custom_call.1} parent=1 // pred_check
      _
    $region3: #{tpu_custom_call.1} parent=1 // pred_check_branch
      %13 = sbr.rel (0) target = $region5
    $region4: #{tpu_custom_call.1} parent=1 // pred_region
      _
    $region5: #{tpu_custom_call.1} parent=1 // pred_fallthru
      _
    // Predicated region
    $region6: #{tpu_custom_call.1} parent=1 // pred_check
      _
    $region7: #{tpu_custom_call.1} parent=1 // pred_check_branch
      %15 = sbr.rel (0) target = $region9
    $region8: #{tpu_custom_call.1} parent=1 // pred_region
      _
    $region9: #{tpu_custom_call.1} parent=1 // pred_fallthru
      _
    // Predicated region
    $region10: #{tpu_custom_call.1} parent=1 // pred_check
      _
    $region11: #{tpu_custom_call.1} parent=1 // pred_check_branch
      %17 = sbr.rel (0) target = $region13
    $region12: #{tpu_custom_call.1} parent=1 // pred_region
      _
    $region13: #{tpu_custom_call.1} parent=1 // pred_fallthru
      _
    %p19 = scmp.eq.s32.totalorder 0, 0
    // Predicated region
    $region14: #{tpu_custom_call.1} parent=1 // pred_check
      %p20 = pneg %p19
    $region15: #{tpu_custom_call.1} parent=1 // pred_check_branch
      %22 = sbr.rel (%p20) target = $region17
    $region16: #{tpu_custom_call.1} parent=1 // pred_region
      %23 = vst [vmem:[#allocation2] sm:$0x1] 0.0
      %24 = vst [vmem:[#allocation4] sm:$0x1] 0.0
    $region17: #{tpu_custom_call.1} parent=1 // pred_fallthru
      _
    %v25 = vld [vmem:[%s0] sm:$0xf]
    %v26 = vld [vmem:[%s1] sm:$0xf]
    %v27 = vld [vmem:[%s1 + $0x4] sm:$0xf]
    %v28 = vld [vmem:[%s1 + $0x8] sm:$0xf]
    %v29 = vld [vmem:[%s1 + $0xc] sm:$0xf]
    %v30 = vld [vmem:[%s1 + $0x10] sm:$0xf]
    %v31 = vld [vmem:[%s1 + $0x14] sm:$0xf]
    %v32 = vld [vmem:[%s1 + $0x18] sm:$0xf]
    %v33 = vld [vmem:[%s1 + $0x1c] sm:$0xf]
    %v34 = vld [vmem:[%s1 + $0x20] sm:$0xf]
    %v35 = vld [vmem:[%s1 + $0x24] sm:$0xf]
    %v36 = vld [vmem:[%s1 + $0x28] sm:$0xf]
    %v37 = vld [vmem:[%s1 + $0x2c] sm:$0xf]
    %v38 = vld [vmem:[%s1 + $0x30] sm:$0xf]
    %v39 = vld [vmem:[%s1 + $0x34] sm:$0xf]
    %v40 = vld [vmem:[%s1 + $0x38] sm:$0xf]
    %v41 = vld [vmem:[%s1 + $0x3c] sm:$0xf]
    %v58 = vunpack.c.l.b16 %v26
    %v59 = vunpack.c.l.b16 %v27
    %v60 = vunpack.c.l.b16 %v28
    %v61 = vunpack.c.l.b16 %v29
    %v62 = vunpack.c.l.b16 %v30
    %v63 = vunpack.c.l.b16 %v31
    %v64 = vunpack.c.l.b16 %v32
    %v65 = vunpack.c.l.b16 %v33
    %v66 = vunpack.c.l.b16 %v34
    %v67 = vunpack.c.l.b16 %v35
    %v68 = vunpack.c.l.b16 %v36
    %v69 = vunpack.c.l.b16 %v37
    %v70 = vunpack.c.l.b16 %v38
    %v71 = vunpack.c.l.b16 %v39
    %v72 = vunpack.c.l.b16 %v40
    %v73 = vunpack.c.l.b16 %v41
    %v74 = vpack.c.b16 %v59, %v58
    %v75 = vpack.c.b16 %v61, %v60
    %v76 = vpack.c.b16 %v63, %v62
    %v77 = vpack.c.b16 %v65, %v64
    %v78 = vpack.c.b16 %v67, %v66
    %v79 = vpack.c.b16 %v69, %v68
    %v80 = vpack.c.b16 %v71, %v70
    %v81 = vpack.c.b16 %v73, %v72
    %vm82 = vcmask 261120
    %v84 = vsel %vm82, %v25, 0
    %v87 = vsel %vm82, %v74, 0
    %v90 = vsel %vm82, %v75, 0
    %v93 = vsel %vm82, %v76, 0
    %v96 = vsel %vm82, %v77, 0
    %v99 = vsel %vm82, %v78, 0
    %v102 = vsel %vm82, %v79, 0
    %v105 = vsel %vm82, %v80, 0
    %v108 = vsel %vm82, %v81, 0
    %110 = vmatprep.subr.bf16.mxu0 0
    %111 = vmatpush1.bf16.xpose.msra.mxu0 %v108
    %112 = vmatprep.subr.bf16.mxu0 0
    %113 = vmatpush1.bf16.xpose.msra.mxu0 %v105
    %114 = vmatprep.subr.bf16.mxu0 0
    %115 = vmatpush1.bf16.xpose.msra.mxu0 %v102
    %116 = vmatprep.subr.bf16.mxu0 0
    %117 = vmatpush1.bf16.xpose.msra.mxu0 %v99
    %118 = vmatprep.subr.bf16.mxu0 0
    %119 = vmatpush1.bf16.xpose.msra.mxu0 %v96
    %120 = vmatprep.subr.bf16.mxu0 0
    %121 = vmatpush1.bf16.xpose.msra.mxu0 %v93
    %122 = vmatprep.subr.bf16.mxu0 0
    %123 = vmatpush1.bf16.xpose.msra.mxu0 %v90
    %124 = vmatprep.subr.bf16.mxu0 0
    %125 = vmatpush1.bf16.xpose.msra.mxu0 %v87
    %126 = vmatprep.subr.bf16.mxu0 0
    %127 = vmatpush2.bf16.xpose.msra.mxu0 0
    %128 = vmatprep.subr.bf16.mxu0 0
    %129 = vmatpush2.bf16.xpose.msra.mxu0 0
    %130 = vmatprep.subr.bf16.mxu0 0
    %131 = vmatpush2.bf16.xpose.msra.mxu0 0
    %132 = vmatprep.subr.bf16.mxu0 0
    %133 = vmatpush2.bf16.xpose.msra.mxu0 0
    %134 = vmatprep.subr.bf16.mxu0 0
    %135 = vmatpush2.bf16.xpose.msra.mxu0 0
    %136 = vmatprep.subr.bf16.mxu0 0
    %137 = vmatpush2.bf16.xpose.msra.mxu0 0
    %138 = vmatprep.subr.bf16.mxu0 0
    %139 = vmatpush2.bf16.xpose.msra.mxu0 0
    %140 = vmatprep.subr.bf16.mxu0 0
    %141 = vmatpush2.bf16.xpose.msra.mxu0 0
    %142 = vmatprep.mubr.bf16.mxu0 0
    %143 = vmatmul.mubr.bf16.gmra.mxu0 %v84
    %v144 = vpop.f32.mrf.mxu0
    %v145 = vadd.f32 0.0, %v144
    %v146 = vpop.f32.mrf.mxu0
    %v147 = vpop.f32.mrf.mxu0
    %v148 = vpop.f32.mrf.mxu0
    %149 = vdwg.mxu0
    %v150 = vld [vmem:[%s2] sm:$0xff]
    %s151 = smul.u32 0, 128
    %v152 = vlaneseq
    %v153 = vand.u32 %v152, 127
    %v154 = vstv %s151
    %v155 = vadd.s32 %v154, %v153
    %156 = vset.pattern.permute.xlu0 0
    %157 = vperm.xlu0 %156, %v150
    %v158 = vpop.permute.xlu0 %157
    %vm159 = vcmp.eq.s32.totalorder %v155, %v158
    %vm160 = vcmp.ge.s32.totalorder %v150, 0
    %v161 = vsel %vm160, 3.2, -1e+30
    %v162 = vsel %vm159, -32.0, 32.0
    %v163 = vmul.f32 %v162, %v145
    %165 = vset.pattern.permute.xlu0 0
    %166 = vperm.xlu0 %165, %v161
    %v167 = vpop.permute.xlu0 %166
    %v169 = vadd.f32 %v163, %v167
    %v170 = vmul.f32 %v169, 1.442695
    %v171 = vpow.pop %v170
    %v172 = vsel %vm159, %v171, 0.0
    %v173 = vrot.slane %v172, 4
    %v174 = vadd.f32 %v172, %v173
    %v175 = vrot.slane %v174, 2
    %v176 = vadd.f32 %v174, %v175
    %v177 = vrot.slane %v176, 1
    %v178 = vadd.f32 %v176, %v177
    %v179 = vrot.slane %v171, 4
    %v180 = vadd.f32 %v171, %v179
    %v181 = vrot.slane %v180, 2
    %v182 = vadd.f32 %v180, %v181
    %v183 = vrot.slane %v182, 1
    %v184 = vadd.f32 %v182, %v183
    %v185 = vld [vmem:[#allocation2] sm:$0x1]
    %v186 = vadd.f32 %v185, %v178
    %187 = vst [vmem:[#allocation2] sm:$0x1] %v186
    %v188 = vld [vmem:[#allocation4] sm:$0x1]
    %v189 = vsub.f32 %v184, %v178
    %v190 = vadd.f32 %v188, %v189
    %191 = vst [vmem:[#allocation4] sm:$0x1] %v190
    // Predicated region
    $region18: #{tpu_custom_call.1} parent=1 // pred_check
      _
    $region19: #{tpu_custom_call.1} parent=1 // pred_check_branch
      %193 = sbr.rel (0) target = $region21
    $region20: #{tpu_custom_call.1} parent=1 // pred_region
      %s195 = ssub.s32 16, 16
      %196 = vsyncadd [#allocation3], %s195
      %s198 = sshll.u32 [#allocation2], 4
      %s199 = int_to_ptr.vmem [resolvable:$true] %s198
      %201 = dma.vmem_to_hbm [thread:$0]  %s199, 16, %s3, [#allocation3]
    $region21: #{tpu_custom_call.1} parent=1 // pred_fallthru
      _
    // Predicated region
    $region22: #{tpu_custom_call.1} parent=1 // pred_check
      _
    $region23: #{tpu_custom_call.1} parent=1 // pred_check_branch
      %203 = sbr.rel (0) target = $region25
    $region24: #{tpu_custom_call.1} parent=1 // pred_region
      %s205 = ssub.s32 16, 16
      %206 = vsyncadd [#allocation5], %s205
      %s208 = sshll.u32 [#allocation4], 4
      %s209 = int_to_ptr.vmem [resolvable:$true] %s208
      %211 = dma.vmem_to_hbm [thread:$0]  %s209, 16, %s4, [#allocation5]
    $region25: #{tpu_custom_call.1} parent=1 // pred_fallthru
      _
    // Predicated region
    $region26: #{tpu_custom_call.1} parent=1 // pred_check
      _
    $region27: #{tpu_custom_call.1} parent=1 // pred_check_branch
      %213 = sbr.rel (0) target = $region29
    $region28: #{tpu_custom_call.1} parent=1 // pred_region
      %214 = dma.done [#allocation3], 16
    $region29: #{tpu_custom_call.1} parent=1 // pred_fallthru
      _
    // Predicated region
    $region30: #{tpu_custom_call.1} parent=1 // pred_check
      _
    $region31: #{tpu_custom_call.1} parent=1 // pred_check_branch
      %216 = sbr.rel (0) target = $region33
    $region32: #{tpu_custom_call.1} parent=1 // pred_region
      %217 = dma.done [#allocation5], 16
    $region33: #{tpu_custom_call.1} parent=1 // pred_fallthru
      _
    %218 = vsyncpa [#allocation3], 1
    %219 = vsyncpa [#allocation5], 1

</llo_original>
